<compile_context>
chip_gen: v7x
topology: tpu7x:2x2x1
jax: 0.10.0
libtpu: 0.0.40
codegen_flags: <defaults>
</compile_context>

<pallas_src>
import math
from functools import partial

import jax
import jax.numpy as jnp
from jax.experimental import pallas as pl
from jax.experimental.pallas import tpu as pltpu

EPSILON = 1e-06
LOG_STD_MAX = 2.0
LOG_STD_MIN = -20.0
NN_LAYER_1 = 100
NN_LAYER_2 = 100

_HIDDEN_PAD = 128                      # lane-dense padded hidden width
_LOG_SQRT_2PI = 0.5 * math.log(2.0 * math.pi)


def _round_up(x, m):
    return ((x + m - 1) // m) * m


def _policy_sac_kernel(state_ref, w1_ref, b1_ref, w2_ref, b2_ref,
                       wh_ref, bh_ref, eps_ref,
                       action_ref, logp_ref):
    x = state_ref[...]                                                  # (TB, D)

    # hidden layer 1: (TB, D) @ (D, 128) -> (TB, 128), ReLU
    h1 = jnp.dot(x, w1_ref[...], preferred_element_type=jnp.float32) + b1_ref[...]
    h1 = jnp.maximum(h1, 0.0)

    # hidden layer 2: (TB, 128) @ (128, 128) -> (TB, 128), ReLU
    h2 = jnp.dot(h1, w2_ref[...], preferred_element_type=jnp.float32) + b2_ref[...]
    h2 = jnp.maximum(h2, 0.0)

    # fused heads: (TB, 128) @ (128, 2A) -> (TB, 2A) ; [:, :A]=mean, [:, A:]=log_std
    heads = jnp.dot(h2, wh_ref[...], preferred_element_type=jnp.float32) + bh_ref[...]
    A = action_ref.shape[-1]
    mean = heads[:, :A]
    log_std = jnp.clip(heads[:, A:], LOG_STD_MIN, LOG_STD_MAX)
    std = jnp.exp(log_std)

    # reparameterized sample with a single scalar N(0,1) draw (matches torch code)
    eps = eps_ref[0, 0]
    z = mean + std * eps
    action = jnp.tanh(z)

    # Normal(mean, std).log_prob(z) - log(1 - action^2 + EPSILON)
    #   (z - mean)/std == eps  and  log(std) == log_std, so no divide / extra log.
    log_prob = ((-0.5 * eps * eps - _LOG_SQRT_2PI)
                - log_std
                - jnp.log(1.0 - action * action + EPSILON))

    action_ref[...] = action
    logp_ref[...] = jnp.sum(log_prob, axis=-1, keepdims=True)


@partial(jax.jit, static_argnames=())
def policy_network_sac_forward(state, params, eps_scalar):
    """state: (B, num_inputs) f32.  Returns (action (B, A), log_prob (B, 1))."""
    B, D = state.shape
    A = params["wm"].shape[1]
    H1_raw = params["w1"].shape[1]
    H2_raw = params["w2"].shape[1]
    H1 = _round_up(H1_raw, _HIDDEN_PAD)
    H2 = _round_up(H2_raw, _HIDDEN_PAD)

    # --- zero-pad hidden width to 128 (math-preserving: zero cols / rows / bias) ---
    w1 = jnp.pad(params["w1"], ((0, 0), (0, H1 - H1_raw)))             # (D, H1)
    b1 = jnp.pad(params["b1"], ((0, 0), (0, H1 - H1_raw)))             # (1, H1)
    w2 = jnp.pad(params["w2"], ((0, H1 - H1_raw), (0, H2 - H2_raw)))   # (H1, H2)
    b2 = jnp.pad(params["b2"], ((0, 0), (0, H2 - H2_raw)))             # (1, H2)
    # --- fuse the two heads into one matmul ---
    wh = jnp.concatenate(
        [jnp.pad(params["wm"], ((0, H2 - H2_raw), (0, 0))),
         jnp.pad(params["ws"], ((0, H2 - H2_raw), (0, 0)))], axis=1)   # (H2, 2A)
    bh = jnp.concatenate([params["bm"], params["bs"]], axis=1)         # (1, 2A)

    # --- batch tiling: grid over B, weights resident across steps ---
    TB = min(256, _round_up(B, 8))
    B_pad = _round_up(B, TB)
    state_p = jnp.pad(state, ((0, B_pad - B), (0, 0)))
    grid = (B_pad // TB,)

    eps_arr = jnp.asarray(eps_scalar, jnp.float32).reshape(1, 1)

    resident = lambda i: (0, 0)          # weights: same block every grid step
    batched = lambda i: (i, 0)           # state / outputs: tile along batch

    action_p, log_prob_p = pl.pallas_call(
        _policy_sac_kernel,
        grid=grid,
        out_shape=(
            jax.ShapeDtypeStruct((B_pad, A), jnp.float32),
            jax.ShapeDtypeStruct((B_pad, 1), jnp.float32),
        ),
        in_specs=[
            pl.BlockSpec((TB, D), batched),
            pl.BlockSpec((D, H1), resident),
            pl.BlockSpec((1, H1), resident),
            pl.BlockSpec((H1, H2), resident),
            pl.BlockSpec((1, H2), resident),
            pl.BlockSpec((H2, 2 * A), resident),
            pl.BlockSpec((1, 2 * A), resident),
            pl.BlockSpec((1, 1), resident, memory_space=pltpu.MemorySpace.SMEM),
        ],
        out_specs=(
            pl.BlockSpec((TB, A), batched),
            pl.BlockSpec((TB, 1), batched),
        ),
        compiler_params=pltpu.CompilerParams(
            dimension_semantics=("parallel",)),
    )(state_p, w1, b1, w2, b2, wh, bh, eps_arr)

    return action_p[:B], log_prob_p[:B]


def init_params(key, num_inputs, num_actions):
    """Deterministic init mirroring nn.Linear's U(-1/sqrt(fan_in), 1/sqrt(fan_in))."""
    def linear(k, fan_in, fan_out):
        kw, kb = jax.random.split(k)
        bound = 1.0 / math.sqrt(fan_in)
        w = jax.random.uniform(kw, (fan_in, fan_out), jnp.float32, -bound, bound)
        b = jax.random.uniform(kb, (1, fan_out), jnp.float32, -bound, bound)
        return w, b

    k1, k2, k3, k4 = jax.random.split(key, 4)
    w1, b1 = linear(k1, num_inputs, NN_LAYER_1)
    w2, b2 = linear(k2, NN_LAYER_1, NN_LAYER_2)
    wm, bm = linear(k3, NN_LAYER_2, num_actions)
    ws, bs = linear(k4, NN_LAYER_2, num_actions)
    return {"w1": w1, "b1": b1, "w2": w2, "b2": b2,
            "wm": wm, "bm": bm, "ws": ws, "bs": bs}


def _reference_forward(state, params, eps_scalar):
    """Pure-JAX reference of the PyTorch forward, for correctness checking."""
    h1 = jnp.maximum(state @ params["w1"] + params["b1"], 0.0)
    h2 = jnp.maximum(h1 @ params["w2"] + params["b2"], 0.0)
    mean = h2 @ params["wm"] + params["bm"]
    log_std = jnp.clip(h2 @ params["ws"] + params["bs"], LOG_STD_MIN, LOG_STD_MAX)
    std = jnp.exp(log_std)
    z = mean + std * eps_scalar
    action = jnp.tanh(z)
    log_prob = (-0.5 * ((z - mean) / std) ** 2 - jnp.log(std) - _LOG_SQRT_2PI
                - jnp.log(1.0 - action * action + EPSILON))
    return action, jnp.sum(log_prob, axis=-1, keepdims=True)


if __name__ == "__main__":
    key = jax.random.PRNGKey(0)
    k_state, k_params, k_eps = jax.random.split(key, 3)

    B = 2            # batch
    NUM_INPUTS = 12  # e.g. lidar beams + pose features
    NUM_ACTIONS = 2  # steering, speed

    state = jax.random.normal(k_state, (B, NUM_INPUTS), jnp.float32)
    params = init_params(k_params, NUM_INPUTS, NUM_ACTIONS)
    eps = jax.random.normal(k_eps, ())  # scalar N(0,1), same as Normal(0,1).sample()

    action, log_prob = policy_network_sac_forward(state, params, eps)
    jax.block_until_ready((action, log_prob))

    assert action.shape == (B, NUM_ACTIONS)
    assert log_prob.shape == (B, 1)
    assert bool(jnp.all(jnp.isfinite(action))) and bool(jnp.all(jnp.isfinite(log_prob)))

    # check against a pure-JAX reference of the original module
    ref_action, ref_logp = _reference_forward(state, params, eps)
    assert bool(jnp.allclose(action, ref_action, atol=1e-5, rtol=1e-5))
    assert bool(jnp.allclose(log_prob, ref_logp, atol=1e-4, rtol=1e-4))

    print("KERNEL_OK")
</pallas_src>

<mosaic_0001>
module attributes {stable_mosaic.version = 11 : i64} {
  func.func @_policy_sac_kernel(%arg0: i32, %arg1: memref<8x12xf32, #tpu.memory_space<vmem>>, %arg2: memref<12x128xf32, #tpu.memory_space<vmem>>, %arg3: memref<1x128xf32, #tpu.memory_space<vmem>>, %arg4: memref<128x128xf32, #tpu.memory_space<vmem>>, %arg5: memref<1x128xf32, #tpu.memory_space<vmem>>, %arg6: memref<128x4xf32, #tpu.memory_space<vmem>>, %arg7: memref<1x4xf32, #tpu.memory_space<vmem>>, %arg8: memref<1x1xf32, #tpu.memory_space<smem>>, %arg9: memref<8x2xf32, #tpu.memory_space<vmem>>, %arg10: memref<8x1xf32, #tpu.memory_space<vmem>>) attributes {dimension_semantics = [#tpu.dimension_semantics<parallel>], iteration_bounds = array<i64: 1>, scalar_prefetch = 0 : i64, scratch_operands = 0 : i64, tpu.core_type = #tpu.core_type<tc>, window_params = [{transform_indices = @transform_0, window_bounds = array<i64: 8, 12>}, {pipeline_mode = #tpu.pipeline_mode<synchronous>, transform_indices = @transform_1, window_bounds = array<i64: 12, 128>}, {pipeline_mode = #tpu.pipeline_mode<synchronous>, transform_indices = @transform_2, window_bounds = array<i64: 1, 128>}, {pipeline_mode = #tpu.pipeline_mode<synchronous>, transform_indices = @transform_3, window_bounds = array<i64: 128, 128>}, {pipeline_mode = #tpu.pipeline_mode<synchronous>, transform_indices = @transform_4, window_bounds = array<i64: 1, 128>}, {pipeline_mode = #tpu.pipeline_mode<synchronous>, transform_indices = @transform_5, window_bounds = array<i64: 128, 4>}, {pipeline_mode = #tpu.pipeline_mode<synchronous>, transform_indices = @transform_6, window_bounds = array<i64: 1, 4>}, {transform_indices = @transform_7, window_bounds = array<i64: 1, 1>}, {transform_indices = @transform_8, window_bounds = array<i64: 8, 2>}, {transform_indices = @transform_9, window_bounds = array<i64: 8, 1>}]} {
    %c0 = arith.constant 0 : index
    %c0_0 = arith.constant 0 : index
    %0 = vector.load %arg1[%c0, %c0_0] : memref<8x12xf32, #tpu.memory_space<vmem>>, vector<8x12xf32>
    %c0_1 = arith.constant 0 : index
    %c0_2 = arith.constant 0 : index
    %1 = vector.load %arg2[%c0_1, %c0_2] : memref<12x128xf32, #tpu.memory_space<vmem>>, vector<12x128xf32>
    %cst = arith.constant dense<0.000000e+00> : vector<8x128xf32>
    %2 = tpu.matmul %0, %1, %cst {dimension_numbers = #tpu.dot_dimension_numbers<[1], [0], [0], [1], [0, 0, 1, 1], [], []>} : vector<8x12xf32>, vector<12x128xf32>, vector<8x128xf32> -> vector<8x128xf32>
    %c0_3 = arith.constant 0 : index
    %c0_4 = arith.constant 0 : index
    %3 = vector.load %arg3[%c0_3, %c0_4] : memref<1x128xf32, #tpu.memory_space<vmem>>, vector<1x128xf32>
    %4 = vector.broadcast %3 : vector<1x128xf32> to vector<8x128xf32>
    %5 = arith.addf %2, %4 : vector<8x128xf32>
    %cst_5 = arith.constant 0.000000e+00 : f32
    %6 = vector.broadcast %cst_5 : f32 to vector<8x128xf32>
    %7 = arith.maximumf %5, %6 : vector<8x128xf32>
    %c0_6 = arith.constant 0 : index
    %c0_7 = arith.constant 0 : index
    %8 = vector.load %arg4[%c0_6, %c0_7] : memref<128x128xf32, #tpu.memory_space<vmem>>, vector<128x128xf32>
    %cst_8 = arith.constant dense<0.000000e+00> : vector<8x128xf32>
    %9 = tpu.matmul %7, %8, %cst_8 {dimension_numbers = #tpu.dot_dimension_numbers<[1], [0], [0], [1], [0, 0, 1, 1], [], []>} : vector<8x128xf32>, vector<128x128xf32>, vector<8x128xf32> -> vector<8x128xf32>
    %c0_9 = arith.constant 0 : index
    %c0_10 = arith.constant 0 : index
    %10 = vector.load %arg5[%c0_9, %c0_10] : memref<1x128xf32, #tpu.memory_space<vmem>>, vector<1x128xf32>
    %11 = vector.broadcast %10 : vector<1x128xf32> to vector<8x128xf32>
    %12 = arith.addf %9, %11 : vector<8x128xf32>
    %cst_11 = arith.constant 0.000000e+00 : f32
    %13 = vector.broadcast %cst_11 : f32 to vector<8x128xf32>
    %14 = arith.maximumf %12, %13 : vector<8x128xf32>
    %c0_12 = arith.constant 0 : index
    %c0_13 = arith.constant 0 : index
    %15 = vector.load %arg6[%c0_12, %c0_13] : memref<128x4xf32, #tpu.memory_space<vmem>>, vector<128x4xf32>
    %cst_14 = arith.constant dense<0.000000e+00> : vector<8x4xf32>
    %16 = tpu.matmul %14, %15, %cst_14 {dimension_numbers = #tpu.dot_dimension_numbers<[1], [0], [0], [1], [0, 0, 1, 1], [], []>} : vector<8x128xf32>, vector<128x4xf32>, vector<8x4xf32> -> vector<8x4xf32>
    %c0_15 = arith.constant 0 : index
    %c0_16 = arith.constant 0 : index
    %17 = vector.load %arg7[%c0_15, %c0_16] : memref<1x4xf32, #tpu.memory_space<vmem>>, vector<1x4xf32>
    %18 = vector.broadcast %17 : vector<1x4xf32> to vector<8x4xf32>
    %19 = arith.addf %16, %18 : vector<8x4xf32>
    %20 = vector.extract_strided_slice %19 {offsets = [0, 0], sizes = [8, 2], strides = [1, 1]} : vector<8x4xf32> to vector<8x2xf32>
    %21 = vector.extract_strided_slice %19 {offsets = [0, 2], sizes = [8, 2], strides = [1, 1]} : vector<8x4xf32> to vector<8x2xf32>
    %cst_17 = arith.constant -2.000000e+01 : f32
    %cst_18 = arith.constant 2.000000e+00 : f32
    %22 = vector.broadcast %cst_17 : f32 to vector<8x2xf32>
    %23 = arith.maximumf %22, %21 : vector<8x2xf32>
    %24 = vector.broadcast %cst_18 : f32 to vector<8x2xf32>
    %25 = arith.minimumf %24, %23 : vector<8x2xf32>
    %26 = math.exp %25 : vector<8x2xf32>
    %c0_19 = arith.constant 0 : index
    %c0_20 = arith.constant 0 : index
    %27 = memref.load %arg8[%c0_19, %c0_20] : memref<1x1xf32, #tpu.memory_space<smem>>
    %28 = vector.broadcast %27 : f32 to vector<8x2xf32>
    %29 = arith.mulf %26, %28 : vector<8x2xf32>
    %30 = arith.addf %20, %29 : vector<8x2xf32>
    %31 = math.tanh %30 : vector<8x2xf32>
    %cst_21 = arith.constant -5.000000e-01 : f32
    %32 = arith.mulf %cst_21, %27 : f32
    %33 = arith.mulf %32, %27 : f32
    %cst_22 = arith.constant 0.918938517 : f32
    %34 = arith.subf %33, %cst_22 : f32
    %35 = vector.broadcast %34 : f32 to vector<8x2xf32>
    %36 = arith.subf %35, %25 : vector<8x2xf32>
    %37 = arith.mulf %31, %31 : vector<8x2xf32>
    %cst_23 = arith.constant 1.000000e+00 : f32
    %38 = vector.broadcast %cst_23 : f32 to vector<8x2xf32>
    %39 = arith.subf %38, %37 : vector<8x2xf32>
    %cst_24 = arith.constant 9.99999997E-7 : f32
    %40 = vector.broadcast %cst_24 : f32 to vector<8x2xf32>
    %41 = arith.addf %39, %40 : vector<8x2xf32>
    %42 = math.log %41 : vector<8x2xf32>
    %43 = arith.subf %36, %42 : vector<8x2xf32>
    %c0_25 = arith.constant 0 : index
    %c0_26 = arith.constant 0 : index
    %44 = vector.load %arg9[%c0_25, %c0_26] : memref<8x2xf32, #tpu.memory_space<vmem>>, vector<8x2xf32>
    tpu.vector_store %arg9[%c0_25, %c0_26], %31 {strides = array<i32>} : memref<8x2xf32, #tpu.memory_space<vmem>>, vector<8x2xf32>,
    %cst_27 = arith.constant dense<0.000000e+00> : vector<8xf32>
    %45 = vector.multi_reduction <add>, %43, %cst_27 [1] : vector<8x2xf32> to vector<8xf32>
    %46 = vector.shape_cast %45 : vector<8xf32> to vector<8x1xf32>
    %c0_28 = arith.constant 0 : index
    %c0_29 = arith.constant 0 : index
    %47 = vector.load %arg10[%c0_28, %c0_29] : memref<8x1xf32, #tpu.memory_space<vmem>>, vector<8x1xf32>
    tpu.vector_store %arg10[%c0_28, %c0_29], %46 {strides = array<i32>} : memref<8x1xf32, #tpu.memory_space<vmem>>, vector<8x1xf32>,
    return
  }
  func.func @transform_0(%arg0: i32) -> (i32, i32) {
    %c0_i32 = arith.constant 0 : i32
    %c0_i32_0 = arith.constant 0 : i32
    return %arg0, %c0_i32 : i32, i32
  }
  func.func @transform_1(%arg0: i32) -> (i32, i32) {
    %c0_i32 = arith.constant 0 : i32
    %c0_i32_0 = arith.constant 0 : i32
    %c0_i32_1 = arith.constant 0 : i32
    return %c0_i32, %c0_i32_0 : i32, i32
  }
  func.func @transform_2(%arg0: i32) -> (i32, i32) {
    %c0_i32 = arith.constant 0 : i32
    %c0_i32_0 = arith.constant 0 : i32
    %c0_i32_1 = arith.constant 0 : i32
    return %c0_i32, %c0_i32_0 : i32, i32
  }
  func.func @transform_3(%arg0: i32) -> (i32, i32) {
    %c0_i32 = arith.constant 0 : i32
    %c0_i32_0 = arith.constant 0 : i32
    %c0_i32_1 = arith.constant 0 : i32
    return %c0_i32, %c0_i32_0 : i32, i32
  }
  func.func @transform_4(%arg0: i32) -> (i32, i32) {
    %c0_i32 = arith.constant 0 : i32
    %c0_i32_0 = arith.constant 0 : i32
    %c0_i32_1 = arith.constant 0 : i32
    return %c0_i32, %c0_i32_0 : i32, i32
  }
  func.func @transform_5(%arg0: i32) -> (i32, i32) {
    %c0_i32 = arith.constant 0 : i32
    %c0_i32_0 = arith.constant 0 : i32
    %c0_i32_1 = arith.constant 0 : i32
    return %c0_i32, %c0_i32_0 : i32, i32
  }
  func.func @transform_6(%arg0: i32) -> (i32, i32) {
    %c0_i32 = arith.constant 0 : i32
    %c0_i32_0 = arith.constant 0 : i32
    %c0_i32_1 = arith.constant 0 : i32
    return %c0_i32, %c0_i32_0 : i32, i32
  }
  func.func @transform_7(%arg0: i32) -> (i32, i32) {
    %c0_i32 = arith.constant 0 : i32
    %c0_i32_0 = arith.constant 0 : i32
    %c0_i32_1 = arith.constant 0 : i32
    return %c0_i32, %c0_i32_0 : i32, i32
  }
  func.func @transform_8(%arg0: i32) -> (i32, i32) {
    %c0_i32 = arith.constant 0 : i32
    %c0_i32_0 = arith.constant 0 : i32
    return %arg0, %c0_i32 : i32, i32
  }
  func.func @transform_9(%arg0: i32) -> (i32, i32) {
    %c0_i32 = arith.constant 0 : i32
    %c0_i32_0 = arith.constant 0 : i32
    return %arg0, %c0_i32 : i32, i32
  }
}

</mosaic_0001>

<llo_original>
// kernel: policy_network_sac_forward.1
$region0: #{policy_network_sac_forward.1}
  #allocation0 [shape = 'u32[]', space=smem, size = 0x4, offset = 0x4, fixed_abs, tag = 'smem constant byte address 0x4 - core index']
  #allocation1 [shape = 'u32[144,128]{1,0:T(1,128)}', space=vmem, size = 0x12000, scoped, tag = 'internal scratch']
  #allocation2 [shape = 'f32[1,1]{1,0:T(1,128)S(6)}', space=smem, size = 0x200, scoped, tag = 'scoped memory for policy_network_sac_forward.1']
  %s0 = inlined_call_operand.vmem [shape: f32[8,12], index: 0, kind: input, shape index: {}]
  %s1 = inlined_call_operand.vmem [shape: f32[12,128], index: 1, kind: input, shape index: {}]
  %s2 = inlined_call_operand.vmem [shape: f32[1,128], index: 2, kind: input, shape index: {}]
  %s3 = inlined_call_operand.vmem [shape: f32[128,128], index: 3, kind: input, shape index: {}]
  %s4 = inlined_call_operand.vmem [shape: f32[1,128], index: 4, kind: input, shape index: {}]
  %s5 = inlined_call_operand.vmem [shape: f32[128,4], index: 5, kind: input, shape index: {}]
  %s6 = inlined_call_operand.vmem [shape: f32[1,4], index: 6, kind: input, shape index: {}]
  %s7 = inlined_call_operand.<no memory space> [shape: f32[1,1], index: 7, kind: input, shape index: {}]
  %s8 = inlined_call_operand.vmem [shape: f32[8,2], index: 8, kind: output, shape index: {0}]
  %s9 = inlined_call_operand.vmem [shape: f32[8,1], index: 9, kind: output, shape index: {1}]
  %10 = xla_tuple %s8, %s9
  %s11 = sld [smem:[#allocation0]]
  $region50: #{policy_network_sac_forward.1} parent=0
    _
  %s13 = ssub.s32 1, %s11
  %s14 = scalar_select 0, %s13, %s11
  %15 = sst [smem:[#allocation2]] %s7
  // Predicated region
  $region2: #{policy_network_sac_forward.1} parent=0 // pred_check
    _
  $region3: #{policy_network_sac_forward.1} parent=0 // pred_check_branch
    %17 = sbr.rel (0) target = $region5
  $region4: #{policy_network_sac_forward.1} parent=0 // pred_region
    _
  $region5: #{policy_network_sac_forward.1} parent=0 // pred_fallthru
    _
  // Predicated region
  $region6: #{policy_network_sac_forward.1} parent=0 // pred_check
    _
  $region7: #{policy_network_sac_forward.1} parent=0 // pred_check_branch
    %19 = sbr.rel (0) target = $region9
  $region8: #{policy_network_sac_forward.1} parent=0 // pred_region
    _
  $region9: #{policy_network_sac_forward.1} parent=0 // pred_fallthru
    _
  // Predicated region
  $region10: #{policy_network_sac_forward.1} parent=0 // pred_check
    _
  $region11: #{policy_network_sac_forward.1} parent=0 // pred_check_branch
    %21 = sbr.rel (0) target = $region13
  $region12: #{policy_network_sac_forward.1} parent=0 // pred_region
    _
  $region13: #{policy_network_sac_forward.1} parent=0 // pred_fallthru
    _
  // Predicated region
  $region14: #{policy_network_sac_forward.1} parent=0 // pred_check
    _
  $region15: #{policy_network_sac_forward.1} parent=0 // pred_check_branch
    %23 = sbr.rel (0) target = $region17
  $region16: #{policy_network_sac_forward.1} parent=0 // pred_region
    _
  $region17: #{policy_network_sac_forward.1} parent=0 // pred_fallthru
    _
  // Predicated region
  $region18: #{policy_network_sac_forward.1} parent=0 // pred_check
    _
  $region19: #{policy_network_sac_forward.1} parent=0 // pred_check_branch
    %25 = sbr.rel (0) target = $region21
  $region20: #{policy_network_sac_forward.1} parent=0 // pred_region
    _
  $region21: #{policy_network_sac_forward.1} parent=0 // pred_fallthru
    _
  // Predicated region
  $region22: #{policy_network_sac_forward.1} parent=0 // pred_check
    _
  $region23: #{policy_network_sac_forward.1} parent=0 // pred_check_branch
    %27 = sbr.rel (0) target = $region25
  $region24: #{policy_network_sac_forward.1} parent=0 // pred_region
    _
  $region25: #{policy_network_sac_forward.1} parent=0 // pred_fallthru
    _
  // Predicated region
  $region26: #{policy_network_sac_forward.1} parent=0 // pred_check
    _
  $region27: #{policy_network_sac_forward.1} parent=0 // pred_check_branch
    %29 = sbr.rel (0) target = $region29
  $region28: #{policy_network_sac_forward.1} parent=0 // pred_region
    _
  $region29: #{policy_network_sac_forward.1} parent=0 // pred_fallthru
    _
  // Predicated region
  $region30: #{policy_network_sac_forward.1} parent=0 // pred_check
    _
  $region31: #{policy_network_sac_forward.1} parent=0 // pred_check_branch
    %31 = sbr.rel (0) target = $region33
  $region32: #{policy_network_sac_forward.1} parent=0 // pred_region
    _
  $region33: #{policy_network_sac_forward.1} parent=0 // pred_fallthru
    _
  %v32 = vld [vmem:[%s0] sm:$0xff]
  %v33 = vld [vmem:[%s1] sm:$0xff]
  %v34 = vld [vmem:[%s1 + $0x8] sm:$0xf]
  %v35 = vld [vmem:[%s2] sm:$0x1]
  %v37 = vlaneseq
  %v38 = vshrl.u32 %v37, 7
  %v39 = vsub.s32 0, %v38
  %v40 = vrot.slane %v35, %v39
  %vm42 = vcmask 97280
  %v44 = vsel %vm42, %v32, 0
  %vm46 = vcmask 1043456
  %v48 = vsel %vm46, %v34, 0
  %50 = vmatprep.subr.mxu0 0.0
  %51 = vmatpush1.msra.mxu0 %v33
  %52 = vmatprep.subr.mxu0 0.0
  %53 = vmatpush1.msra.mxu0 %v48
  %54 = vmatprep.subr.mxu0 0.0
  %55 = vmatpush1.msra.mxu0 0.0
  %56 = vmatprep.subr.mxu0 0.0
  %57 = vmatpush1.msra.mxu0 0.0
  %58 = vmatprep.subr.mxu0 0.0
  %59 = vmatpush1.msra.mxu0 0.0
  %60 = vmatprep.subr.mxu0 0.0
  %61 = vmatpush1.msra.mxu0 0.0
  %62 = vmatprep.subr.mxu0 0.0
  %63 = vmatpush1.msra.mxu0 0.0
  %64 = vmatprep.subr.mxu0 0.0
  %65 = vmatpush1.msra.mxu0 0.0
  %66 = vmatprep.subr.mxu0 0.0
  %67 = vmatpush1.msra.mxu0 0.0
  %68 = vmatprep.subr.mxu0 0.0
  %69 = vmatpush1.msra.mxu0 0.0
  %70 = vmatprep.subr.mxu0 0.0
  %71 = vmatpush1.msra.mxu0 0.0
  %72 = vmatprep.subr.mxu0 0.0
  %73 = vmatpush1.msra.mxu0 0.0
  %74 = vmatprep.subr.mxu0 0.0
  %75 = vmatpush1.msra.mxu0 0.0
  %76 = vmatprep.subr.mxu0 0.0
  %77 = vmatpush1.msra.mxu0 0.0
  %78 = vmatprep.subr.mxu0 0.0
  %79 = vmatpush1.msra.mxu0 0.0
  %80 = vmatprep.subr.mxu0 0.0
  %81 = vmatpush1.msra.mxu0 0.0
  %82 = vmatprep.subr.mxu0 0.0
  %83 = vmatpush1.msra.mxu0 0.0
  %84 = vmatprep.subr.mxu0 0.0
  %85 = vmatpush1.msra.mxu0 0.0
  %86 = vmatprep.subr.mxu0 0.0
  %87 = vmatpush1.msra.mxu0 0.0
  %88 = vmatprep.subr.mxu0 0.0
  %89 = vmatpush1.msra.mxu0 0.0
  %90 = vmatprep.subr.mxu0 0.0
  %91 = vmatpush1.msra.mxu0 0.0
  %92 = vmatprep.subr.mxu0 0.0
  %93 = vmatpush1.msra.mxu0 0.0
  %94 = vmatprep.subr.mxu0 0.0
  %95 = vmatpush1.msra.mxu0 0.0
  %96 = vmatprep.subr.mxu0 0.0
  %97 = vmatpush1.msra.mxu0 0.0
  %98 = vmatprep.subr.mxu0 0.0
  %99 = vmatpush1.msra.mxu0 0.0
  %100 = vmatprep.subr.mxu0 0.0
  %101 = vmatpush1.msra.mxu0 0.0
  %102 = vmatprep.subr.mxu0 0.0
  %103 = vmatpush1.msra.mxu0 0.0
  %104 = vmatprep.subr.mxu0 0.0
  %105 = vmatpush1.msra.mxu0 0.0
  %106 = vmatprep.subr.mxu0 0.0
  %107 = vmatpush1.msra.mxu0 0.0
  %108 = vmatprep.subr.mxu0 0.0
  %109 = vmatpush1.msra.mxu0 0.0
  %110 = vmatprep.subr.mxu0 0.0
  %111 = vmatpush1.msra.mxu0 0.0
  %112 = vmatprep.subr.mxu0 0.0
  %113 = vmatpush1.msra.mxu0 0.0
  %114 = vmatprep.mubr.f32.mxu0 0.0
  %115 = vmatmul.mubr.f32.gmra.mrb[0].mxu0 %v44
  %v116 = vpop.f32.mrb[0].mxu0
  %v117 = vadd.f32 %v40, %v116
  %v118 = vpop.f32.mrb[0].mxu0
  %119 = vdwg.mxu0
  %v120 = vmax.f32 %v117, 0.0
  %v121 = vld [vmem:[%s3] sm:$0xff]
  %v122 = vld [vmem:[%s3 + $0x8] sm:$0xff]
  %v123 = vld [vmem:[%s3 + $0x10] sm:$0xff]
  %v124 = vld [vmem:[%s3 + $0x18] sm:$0xff]
  %v125 = vld [vmem:[%s3 + $0x20] sm:$0xff]
  %v126 = vld [vmem:[%s3 + $0x28] sm:$0xff]
  %v127 = vld [vmem:[%s3 + $0x30] sm:$0xff]
  %v128 = vld [vmem:[%s3 + $0x38] sm:$0xff]
  %v129 = vld [vmem:[%s3 + $0x40] sm:$0xff]
  %v130 = vld [vmem:[%s3 + $0x48] sm:$0xff]
  %v131 = vld [vmem:[%s3 + $0x50] sm:$0xff]
  %v132 = vld [vmem:[%s3 + $0x58] sm:$0xff]
  %v133 = vld [vmem:[%s3 + $0x60] sm:$0xff]
  %v134 = vld [vmem:[%s3 + $0x68] sm:$0xff]
  %v135 = vld [vmem:[%s3 + $0x70] sm:$0xff]
  %v136 = vld [vmem:[%s3 + $0x78] sm:$0xff]
  %v137 = vld [vmem:[%s4] sm:$0x1]
  %v139 = vlaneseq
  %v140 = vshrl.u32 %v139, 7
  %v141 = vsub.s32 0, %v140
  %v142 = vrot.slane %v137, %v141
  %144 = vmatprep.subr.mxu0 0.0
  %145 = vmatpush1.msra.mxu0 %v121
  %146 = vmatprep.subr.mxu0 0.0
  %147 = vmatpush1.msra.mxu0 %v122
  %148 = vmatprep.subr.mxu0 0.0
  %149 = vmatpush1.msra.mxu0 %v123
  %150 = vmatprep.subr.mxu0 0.0
  %151 = vmatpush1.msra.mxu0 %v124
  %152 = vmatprep.subr.mxu0 0.0
  %153 = vmatpush1.msra.mxu0 %v125
  %154 = vmatprep.subr.mxu0 0.0
  %155 = vmatpush1.msra.mxu0 %v126
  %156 = vmatprep.subr.mxu0 0.0
  %157 = vmatpush1.msra.mxu0 %v127
  %158 = vmatprep.subr.mxu0 0.0
  %159 = vmatpush1.msra.mxu0 %v128
  %160 = vmatprep.subr.mxu0 0.0
  %161 = vmatpush1.msra.mxu0 %v129
  %162 = vmatprep.subr.mxu0 0.0
  %163 = vmatpush1.msra.mxu0 %v130
  %164 = vmatprep.subr.mxu0 0.0
  %165 = vmatpush1.msra.mxu0 %v131
  %166 = vmatprep.subr.mxu0 0.0
  %167 = vmatpush1.msra.mxu0 %v132
  %168 = vmatprep.subr.mxu0 0.0
  %169 = vmatpush1.msra.mxu0 %v133
  %170 = vmatprep.subr.mxu0 0.0
  %171 = vmatpush1.msra.mxu0 %v134
  %172 = vmatprep.subr.mxu0 0.0
  %173 = vmatpush1.msra.mxu0 %v135
  %174 = vmatprep.subr.mxu0 0.0
  %175 = vmatpush1.msra.mxu0 %v136
  %176 = vmatprep.subr.mxu0 0.0
  %177 = vmatpush1.msra.mxu0 0.0
  %178 = vmatprep.subr.mxu0 0.0
  %179 = vmatpush1.msra.mxu0 0.0
  %180 = vmatprep.subr.mxu0 0.0
  %181 = vmatpush1.msra.mxu0 0.0
  %182 = vmatprep.subr.mxu0 0.0
  %183 = vmatpush1.msra.mxu0 0.0
  %184 = vmatprep.subr.mxu0 0.0
  %185 = vmatpush1.msra.mxu0 0.0
  %186 = vmatprep.subr.mxu0 0.0
  %187 = vmatpush1.msra.mxu0 0.0
  %188 = vmatprep.subr.mxu0 0.0
  %189 = vmatpush1.msra.mxu0 0.0
  %190 = vmatprep.subr.mxu0 0.0
  %191 = vmatpush1.msra.mxu0 0.0
  %192 = vmatprep.subr.mxu0 0.0
  %193 = vmatpush1.msra.mxu0 0.0
  %194 = vmatprep.subr.mxu0 0.0
  %195 = vmatpush1.msra.mxu0 0.0
  %196 = vmatprep.subr.mxu0 0.0
  %197 = vmatpush1.msra.mxu0 0.0
  %198 = vmatprep.subr.mxu0 0.0
  %199 = vmatpush1.msra.mxu0 0.0
  %200 = vmatprep.subr.mxu0 0.0
  %201 = vmatpush1.msra.mxu0 0.0
  %202 = vmatprep.subr.mxu0 0.0
  %203 = vmatpush1.msra.mxu0 0.0
  %204 = vmatprep.subr.mxu0 0.0
  %205 = vmatpush1.msra.mxu0 0.0
  %206 = vmatprep.subr.mxu0 0.0
  %207 = vmatpush1.msra.mxu0 0.0
  %208 = vmatprep.mubr.f32.mxu0 0.0
  %209 = vmatmul.mubr.f32.gmra.mrb[0].mxu0 %v120
  %v210 = vpop.f32.mrb[0].mxu0
  %v211 = vadd.f32 %v142, %v210
  %v212 = vpop.f32.mrb[0].mxu0
  %213 = vdwg.mxu0
  %v214 = vmax.f32 %v211, 0.0
  %v215 = vld [vmem:[%s5] sm:$0xff]
  %v216 = vld [vmem:[%s5 + $0x8] sm:$0xff]
  %v217 = vld [vmem:[%s5 + $0x10] sm:$0xff]
  %v218 = vld [vmem:[%s5 + $0x18] sm:$0xff]
  %v219 = vld [vmem:[%s5 + $0x20] sm:$0xff]
  %v220 = vld [vmem:[%s5 + $0x28] sm:$0xff]
  %v221 = vld [vmem:[%s5 + $0x30] sm:$0xff]
  %v222 = vld [vmem:[%s5 + $0x38] sm:$0xff]
  %v223 = vld [vmem:[%s5 + $0x40] sm:$0xff]
  %v224 = vld [vmem:[%s5 + $0x48] sm:$0xff]
  %v225 = vld [vmem:[%s5 + $0x50] sm:$0xff]
  %v226 = vld [vmem:[%s5 + $0x58] sm:$0xff]
  %v227 = vld [vmem:[%s5 + $0x60] sm:$0xff]
  %v228 = vld [vmem:[%s5 + $0x68] sm:$0xff]
  %v229 = vld [vmem:[%s5 + $0x70] sm:$0xff]
  %v230 = vld [vmem:[%s5 + $0x78] sm:$0xff]
  %v231 = vld [vmem:[%s6] sm:$0x1]
  %v233 = vlaneseq
  %v234 = vshrl.u32 %v233, 7
  %v235 = vsub.s32 0, %v234
  %v236 = vrot.slane %v231, %v235
  %238 = vmatprep.subr.mxu0 0.0
  %239 = vmatpush1.msra.mxu0 %v215
  %240 = vmatprep.subr.mxu0 0.0
  %241 = vmatpush1.msra.mxu0 %v216
  %242 = vmatprep.subr.mxu0 0.0
  %243 = vmatpush1.msra.mxu0 %v217
  %244 = vmatprep.subr.mxu0 0.0
  %245 = vmatpush1.msra.mxu0 %v218
  %246 = vmatprep.subr.mxu0 0.0
  %247 = vmatpush1.msra.mxu0 %v219
  %248 = vmatprep.subr.mxu0 0.0
  %249 = vmatpush1.msra.mxu0 %v220
  %250 = vmatprep.subr.mxu0 0.0
  %251 = vmatpush1.msra.mxu0 %v221
  %252 = vmatprep.subr.mxu0 0.0
  %253 = vmatpush1.msra.mxu0 %v222
  %254 = vmatprep.subr.mxu0 0.0
  %255 = vmatpush1.msra.mxu0 %v223
  %256 = vmatprep.subr.mxu0 0.0
  %257 = vmatpush1.msra.mxu0 %v224
  %258 = vmatprep.subr.mxu0 0.0
  %259 = vmatpush1.msra.mxu0 %v225
  %260 = vmatprep.subr.mxu0 0.0
  %261 = vmatpush1.msra.mxu0 %v226
  %262 = vmatprep.subr.mxu0 0.0
  %263 = vmatpush1.msra.mxu0 %v227
  %264 = vmatprep.subr.mxu0 0.0
  %265 = vmatpush1.msra.mxu0 %v228
  %266 = vmatprep.subr.mxu0 0.0
  %267 = vmatpush1.msra.mxu0 %v229
  %268 = vmatprep.subr.mxu0 0.0
  %269 = vmatpush1.msra.mxu0 %v230
  %270 = vmatprep.subr.mxu0 0.0
  %271 = vmatpush1.msra.mxu0 0.0
  %272 = vmatprep.subr.mxu0 0.0
  %273 = vmatpush1.msra.mxu0 0.0
  %274 = vmatprep.subr.mxu0 0.0
  %275 = vmatpush1.msra.mxu0 0.0
  %276 = vmatprep.subr.mxu0 0.0
  %277 = vmatpush1.msra.mxu0 0.0
  %278 = vmatprep.subr.mxu0 0.0
  %279 = vmatpush1.msra.mxu0 0.0
  %280 = vmatprep.subr.mxu0 0.0
  %281 = vmatpush1.msra.mxu0 0.0
  %282 = vmatprep.subr.mxu0 0.0
  %283 = vmatpush1.msra.mxu0 0.0
  %284 = vmatprep.subr.mxu0 0.0
  %285 = vmatpush1.msra.mxu0 0.0
  %286 = vmatprep.subr.mxu0 0.0
  %287 = vmatpush1.msra.mxu0 0.0
  %288 = vmatprep.subr.mxu0 0.0
  %289 = vmatpush1.msra.mxu0 0.0
  %290 = vmatprep.subr.mxu0 0.0
  %291 = vmatpush1.msra.mxu0 0.0
  %292 = vmatprep.subr.mxu0 0.0
  %293 = vmatpush1.msra.mxu0 0.0
  %294 = vmatprep.subr.mxu0 0.0
  %295 = vmatpush1.msra.mxu0 0.0
  %296 = vmatprep.subr.mxu0 0.0
  %297 = vmatpush1.msra.mxu0 0.0
  %298 = vmatprep.subr.mxu0 0.0
  %299 = vmatpush1.msra.mxu0 0.0
  %300 = vmatprep.subr.mxu0 0.0
  %301 = vmatpush1.msra.mxu0 0.0
  %302 = vmatprep.mubr.f32.mxu0 0.0
  %303 = vmatmul.mubr.f32.gmra.mrb[0].mxu0 %v214
  %v304 = vpop.f32.mrb[0].mxu0
  %v305 = vadd.f32 %v236, %v304
  %v306 = vpop.f32.mrb[0].mxu0
  %307 = vdwg.mxu0
  %v308 = vmax.f32 %v305, -20.0
  %v309 = vmin.f32 %v308, 2.0
  %v310 = vmul.f32 %v309, 1.442695
  %v311 = vpow.pop %v310
  %s312 = sld [smem:[#allocation2]]
  %v313 = vstv %s312
  %v314 = vmul.f32 %v311, %v313
  %316 = vrot.lane.b32.xlu0 %v314, 126
  %v317 = vpop.permute.xlu0 %316
  %v319 = vadd.f32 %v305, %v317
  %v320 = vtanh.pop %v319
  %s321 = smul.f32 %s312, -0.5
  %s322 = smul.f32 %s321, %s312
  %s323 = ssub.f32 %s322, 0.9189385
  %v324 = vstv %s323
  %v325 = vsub.f32 %v324, %v309
  %v326 = vmul.f32 %v320, %v320
  %v327 = vsub.f32 1.0, %v326
  %v328 = vadd.f32 %v327, 1e-06
  %v329 = vlog2.pop %v328
  %v330 = vmul.f32 %v329, 0.6931472
  %332 = vrot.lane.b32.xlu0 %v330, 2
  %v333 = vpop.permute.xlu0 %332
  %v335 = vsub.f32 %v325, %v333
  %vm336 = vcmask 15360
  %337 = vst.msk [vmem:[%s8] sm:$0xff] %vm336, %v320
  %339 = vrot.lane.b32.xlu0 %v335, 126
  %v340 = vpop.permute.xlu0 %339
  %v342 = vsel %vm336, %v340, 0.0
  %343 = vadd.xlane.f32.xlu0 %v342
  %v344 = vpop.xlane.xlu0 %343
  %vm345 = vcmask 7168
  %346 = vst.msk [vmem:[%s9] sm:$0xff] %vm345, %v344
  // Predicated region
  $region34: #{policy_network_sac_forward.1} parent=0 // pred_check
    _
  $region35: #{policy_network_sac_forward.1} parent=0 // pred_check_branch
    %348 = sbr.rel (0) target = $region37
  $region36: #{policy_network_sac_forward.1} parent=0 // pred_region
    _
  $region37: #{policy_network_sac_forward.1} parent=0 // pred_fallthru
    _
  // Predicated region
  $region38: #{policy_network_sac_forward.1} parent=0 // pred_check
    _
  $region39: #{policy_network_sac_forward.1} parent=0 // pred_check_branch
    %350 = sbr.rel (0) target = $region41
  $region40: #{policy_network_sac_forward.1} parent=0 // pred_region
    _
  $region41: #{policy_network_sac_forward.1} parent=0 // pred_fallthru
    _
  // Predicated region
  $region42: #{policy_network_sac_forward.1} parent=0 // pred_check
    _
  $region43: #{policy_network_sac_forward.1} parent=0 // pred_check_branch
    %352 = sbr.rel (0) target = $region45
  $region44: #{policy_network_sac_forward.1} parent=0 // pred_region
    _
  $region45: #{policy_network_sac_forward.1} parent=0 // pred_fallthru
    _
  // Predicated region
  $region46: #{policy_network_sac_forward.1} parent=0 // pred_check
    _
  $region47: #{policy_network_sac_forward.1} parent=0 // pred_check_branch
    %354 = sbr.rel (0) target = $region49
  $region48: #{policy_network_sac_forward.1} parent=0 // pred_region
    _
  $region49: #{policy_network_sac_forward.1} parent=0 // pred_fallthru
    _

</llo_original>
